<compile_context>
chip_gen: v6e
topology: v6e:2x2x1
jax: 0.10.0
libtpu: 0.0.40
codegen_flags: <defaults>
</compile_context>

<pallas_src>
import jax
import jax.numpy as jnp
from jax.experimental import pallas as pl
from jax.experimental.pallas import tpu as pltpu

_LANES = 128
_TARGET_BLOCK_BYTES = 2 << 20  # ~2 MiB per block per array


def _relu_kernel(x_ref, o_ref):
    # ReLU(x) == x * (x > 0); single-op max keeps vreg pressure minimal.
    o_ref[...] = jnp.maximum(x_ref[...], 0)


def relu(x: jax.Array) -> jax.Array:
    """Elementwise ReLU implemented as a Pallas TPU streaming kernel."""
    orig_shape = x.shape
    orig_dtype = x.dtype

    n = x.size
    if n == 0:
        return x

    x_flat = x.reshape(-1)

    # Fast path: no padding copy when the flat length is lane-divisible.
    pad = (-n) % _LANES
    if pad:
        # Fallback for odd sizes: minimal pad to a lane multiple (one extra
        # copy; does not trigger for typical NCHW activation shapes).
        x_flat = jnp.pad(x_flat, (0, pad))

    rows = x_flat.shape[0] // _LANES
    x2d = x_flat.reshape(rows, _LANES)

    # dtype-aware block rows targeting ~2 MiB blocks; always a multiple of 8.
    itemsize = jnp.dtype(orig_dtype).itemsize
    block_rows = max(8, _TARGET_BLOCK_BYTES // (_LANES * itemsize))

    # Block rows: either the full row extent (small inputs -> single block,
    # "full dim" satisfies the (8,128) rule) or a large 8-aligned tile.
    # Partial last block is masked by Pallas on writeback.
    br = rows if rows <= block_rows else block_rows
    grid = (pl.cdiv(rows, br),)

    out2d = pl.pallas_call(
        _relu_kernel,
        out_shape=jax.ShapeDtypeStruct((rows, _LANES), orig_dtype),
        grid_spec=pl.GridSpec(
            grid=grid,
            in_specs=[pl.BlockSpec((br, _LANES), lambda i: (i, 0))],
            out_specs=pl.BlockSpec((br, _LANES), lambda i: (i, 0)),
        ),
        compiler_params=pltpu.CompilerParams(
            dimension_semantics=("parallel",),
        ),
    )(x2d)

    out_flat = out2d.reshape(-1)
    if pad:
        out_flat = out_flat[:n]
    return out_flat.reshape(orig_shape)


if __name__ == "__main__":
    key = jax.random.PRNGKey(0)
    # Small NCHW-like input consistent with a generic activation module.
    x = jax.random.normal(key, (2, 4, 16, 16), dtype=jnp.float32)

    y = relu(x)
    y = jax.block_until_ready(y)

    # Sanity check against the pure-JAX reference of the torch semantics.
    y_ref = x * (x > 0)
    assert y.shape == x.shape and y.dtype == x.dtype
    assert jnp.allclose(y, y_ref), "mismatch vs reference"

    # Also exercise the non-128-divisible fallback path once.
    x_odd = jax.random.normal(jax.random.PRNGKey(1), (3, 5, 7), dtype=jnp.float32)
    y_odd = jax.block_until_ready(relu(x_odd))
    assert jnp.allclose(y_odd, x_odd * (x_odd > 0)), "mismatch vs reference (odd size)"

    print("KERNEL_OK")
</pallas_src>

<mosaic_0001>
module attributes {stable_mosaic.version = 11 : i64} {
  func.func @_relu_kernel(%arg0: i32, %arg1: memref<16x128xf32, #tpu.memory_space<vmem>>, %arg2: memref<16x128xf32, #tpu.memory_space<vmem>>) attributes {dimension_semantics = [#tpu.dimension_semantics<parallel>], iteration_bounds = array<i64: 1>, scalar_prefetch = 0 : i64, scratch_operands = 0 : i64, tpu.core_type = #tpu.core_type<tc>, window_params = [{transform_indices = @transform_0, window_bounds = array<i64: 16, 128>}, {transform_indices = @transform_1, window_bounds = array<i64: 16, 128>}]} {
    %c0 = arith.constant 0 : index
    %c0_0 = arith.constant 0 : index
    %0 = vector.load %arg1[%c0, %c0_0] : memref<16x128xf32, #tpu.memory_space<vmem>>, vector<16x128xf32>
    %cst = arith.constant 0.000000e+00 : f32
    %1 = vector.broadcast %cst : f32 to vector<16x128xf32>
    %2 = arith.maximumf %0, %1 : vector<16x128xf32>
    %c0_1 = arith.constant 0 : index
    %c0_2 = arith.constant 0 : index
    %3 = vector.load %arg2[%c0_1, %c0_2] : memref<16x128xf32, #tpu.memory_space<vmem>>, vector<16x128xf32>
    tpu.vector_store %arg2[%c0_1, %c0_2], %2 {strides = array<i32>} : memref<16x128xf32, #tpu.memory_space<vmem>>, vector<16x128xf32>,
    return
  }
  func.func @transform_0(%arg0: i32) -> (i32, i32) {
    %c0_i32 = arith.constant 0 : i32
    %c0_i32_0 = arith.constant 0 : i32
    return %arg0, %c0_i32 : i32, i32
  }
  func.func @transform_1(%arg0: i32) -> (i32, i32) {
    %c0_i32 = arith.constant 0 : i32
    %c0_i32_0 = arith.constant 0 : i32
    return %arg0, %c0_i32 : i32, i32
  }
}

</mosaic_0001>

<llo_original>
// kernel: tpu_custom_call.1
$region0: #{tpu_custom_call.1}
  #allocation0 [shape = 'u32[]', space=smem, size = 0x4, offset = 0x4, fixed_abs, tag = 'smem constant byte address 0x4 - core index']
  #allocation1 [shape = 'u32[144,128]{1,0:T(1,128)}', space=vmem, size = 0x12000, scoped, tag = 'internal scratch']
  %s0 = inlined_call_operand.hbm [shape: f32[16,128], index: 0, kind: input, shape index: {}]
  %s1 = inlined_call_operand.hbm [shape: f32[16,128], index: 1, kind: output, shape index: {}]
  %s2 = sld [smem:[#allocation0]]
  $region18: #{tpu_custom_call.1} parent=0
    _
  %s4 = ssub.s32 1, %s2
  %s5 = scalar_select 0, %s4, %s2
  $region1: #{tpu_custom_call.1} parent=0
    #allocation2 [shape = 'u8[8192]{0}', space=vmem, size = 0x2000, scoped, tag = 'input window, operand 0, single buffered']
    #allocation3 [shape = 's32[1]{0}', space=sflag, size = 0x4, scoped, tag = 'scoped memory for tpu_custom_call.1']
    #allocation4 [shape = 's32[1]{0}', space=sflag, size = 0x4, scoped, tag = 'scoped memory for tpu_custom_call.1']
    #allocation5 [shape = 'u8[8192]{0}', space=vmem, size = 0x2000, scoped, tag = 'output window, operand 0, single buffered']
    %6 = vsyncpa [#allocation3], 0
    %7 = vsyncpa [#allocation4], 0
    // Predicated region
    $region2: #{tpu_custom_call.1} parent=1 // pred_check
      _
    $region3: #{tpu_custom_call.1} parent=1 // pred_check_branch
      %9 = sbr.rel (0) target = $region5
    $region4: #{tpu_custom_call.1} parent=1 // pred_region
      %s11 = ssub.s32 256, 256
      %12 = vsyncadd [#allocation3], %s11
      %s13 = sshll.u32 [#allocation2], 4
      %s14 = int_to_ptr.vmem [resolvable:$true] %s13
      %19 = dma.hbm_to_vmem [thread:$0]  %s0, 256, %s14, [#allocation3], 128, 128, 8
    $region5: #{tpu_custom_call.1} parent=1 // pred_fallthru
      _
    // Predicated region
    $region6: #{tpu_custom_call.1} parent=1 // pred_check
      _
    $region7: #{tpu_custom_call.1} parent=1 // pred_check_branch
      %21 = sbr.rel (0) target = $region9
    $region8: #{tpu_custom_call.1} parent=1 // pred_region
      %22 = dma.done [#allocation3], 256
    $region9: #{tpu_custom_call.1} parent=1 // pred_fallthru
      _
    %v23 = vld [vmem:[#allocation2] sm:$0xff]
    %v24 = vld [vmem:[#allocation2 + $0x8] sm:$0xff]
    %v25 = vmax.f32 %v23, 0.0
    %v26 = vmax.f32 %v24, 0.0
    %27 = vst [vmem:[#allocation5] sm:$0xff] %v25
    %28 = vst [vmem:[#allocation5 + $0x8] sm:$0xff] %v26
    // Predicated region
    $region10: #{tpu_custom_call.1} parent=1 // pred_check
      _
    $region11: #{tpu_custom_call.1} parent=1 // pred_check_branch
      %30 = sbr.rel (0) target = $region13
    $region12: #{tpu_custom_call.1} parent=1 // pred_region
      %s32 = ssub.s32 256, 256
      %33 = vsyncadd [#allocation4], %s32
      %s34 = sshll.u32 [#allocation5], 4
      %s35 = int_to_ptr.vmem [resolvable:$true] %s34
      %40 = dma.vmem_to_hbm [thread:$0]  %s35, 256, %s1, [#allocation4], 128, 128, 8
    $region13: #{tpu_custom_call.1} parent=1 // pred_fallthru
      _
    // Predicated region
    $region14: #{tpu_custom_call.1} parent=1 // pred_check
      _
    $region15: #{tpu_custom_call.1} parent=1 // pred_check_branch
      %42 = sbr.rel (0) target = $region17
    $region16: #{tpu_custom_call.1} parent=1 // pred_region
      %43 = dma.done [#allocation4], 256
    $region17: #{tpu_custom_call.1} parent=1 // pred_fallthru
      _
    %44 = vsyncpa [#allocation3], 1
    %45 = vsyncpa [#allocation4], 1

</llo_original>
